<compile_context>
chip_gen: v7x
topology: tpu7x:2x2x1
jax: 0.10.0
libtpu: 0.0.40
codegen_flags: <defaults>
</compile_context>

<pallas_src>
from functools import partial

import jax
import jax.numpy as jnp
import numpy as np
from jax.experimental import pallas as pl
from jax.experimental.pallas import tpu as pltpu


# ----------------------------------------------------------------------------
# Hardware-aware configuration
# ----------------------------------------------------------------------------
def _vmem_capacity_bytes():
    """Physical VMEM per TensorCore (128 MiB on v5e/v6e, 64 MiB on v7x)."""
    try:
        return int(pltpu.get_tpu_info().vmem_capacity_bytes)
    except Exception:
        return 64 * 1024 * 1024          # conservative default (v7x-sized)


def _hw_config():
    vmem = _vmem_capacity_bytes()
    big = vmem >= 96 * 1024 * 1024       # v5e / v6e (128 MiB) vs v7x (64 MiB)
    # All row tiles are the same power of two so the padding multiple (their
    # max) is divided by each of them.
    t = 512 if big else 256
    return dict(
        mm_tm=t,          # projection-matmul row tile (full-K contraction)
        mm_tn=t,          # projection-matmul output-column tile
        attn_tq=t,        # flash-attention q tile
        attn_tkv=t,       # flash-attention kv tile
        vmem_limit=int(min(vmem * 3 // 4, 96 * 1024 * 1024)),
    )


def _fit_tile(dim, pref):
    """`pref` when it divides `dim`, else the full dim (always legal)."""
    return pref if (dim >= pref and dim % pref == 0) else dim


def _round_up(x, m):
    return ((x + m - 1) // m) * m


# ----------------------------------------------------------------------------
# Projection matmul: full-K contraction, grid (M/tm, N/tn)
# ----------------------------------------------------------------------------
def _matmul_kernel(x_ref, w_ref, o_ref):
    o_ref[...] = jnp.dot(x_ref[...], w_ref[...],
                         preferred_element_type=jnp.float32).astype(o_ref.dtype)


def pallas_matmul(x, w, out_dtype, *, tm, tn, vmem_limit):
    """Tiled (M, K) @ (K, N) -> (M, N); bf16 operands, f32 MXU accumulation.
    Full-K contraction (no reduction axis / accumulator scratch): weight blocks
    are re-streamed only M/tm times."""
    M, K = x.shape
    K2, N = w.shape
    assert K == K2
    tm = _fit_tile(M, tm)
    tn = _fit_tile(N, tn)

    out_isz = jnp.dtype(out_dtype).itemsize

    def _est_bytes(tm_):
        # double-buffered bf16 operand blocks + double-buffered output block
        return 2 * (2 * tm_ * K + 2 * K * tn) + 2 * out_isz * tm_ * tn

    # Shrink tm if full-K operand blocks would overflow the VMEM budget.
    # TODO(synk): add a K-tiled (accumulator) fallback for extreme K.
    while tm > 256 and tm % 2 == 0 and M % (tm // 2) == 0 and \
            _est_bytes(tm) > vmem_limit:
        tm //= 2

    return pl.pallas_call(
        _matmul_kernel,
        out_shape=jax.ShapeDtypeStruct((M, N), out_dtype),
        grid=(M // tm, N // tn),
        in_specs=[pl.BlockSpec((tm, K), lambda i, j: (i, 0)),
                  pl.BlockSpec((K, tn), lambda i, j: (0, j))],
        out_specs=pl.BlockSpec((tm, tn), lambda i, j: (i, j)),
        compiler_params=pltpu.CompilerParams(
            dimension_semantics=("parallel", "parallel"),
            vmem_limit_bytes=vmem_limit),
    )(x, w)


# ----------------------------------------------------------------------------
# RoPE pre-pass (hoisted out of the attention loop): head-major, lane-dense
# ----------------------------------------------------------------------------
def _rope_kernel(q_ref, k_ref, cos_ref, sin_ref, qo_ref, ko_ref,
                 *, d_rope, q_scale):
    r2 = d_rope // 2
    c = cos_ref[...]                     # (tr, r2) f32
    s = sin_ref[...]

    def rot(x_ref, o_ref, scl):
        x = x_ref[0].astype(jnp.float32)             # (tr, dh)
        x1 = x[:, :r2]
        x2 = x[:, r2:d_rope]
        parts = [x1 * c - x2 * s, x2 * c + x1 * s]   # NeoX (non-interleaved)
        if d_rope < x.shape[1]:
            parts.append(x[:, d_rope:])
        out = jnp.concatenate(parts, axis=-1)
        if scl != 1.0:
            out = out * scl                          # 1/sqrt(dh) folded here
        o_ref[0] = out.astype(o_ref.dtype)

    rot(q_ref, qo_ref, q_scale)
    rot(k_ref, ko_ref, 1.0)


def pallas_rope(q_hm, k_hm, cos_t, sin_t, *, d_rope, q_scale, tr, vmem_limit):
    """q_hm/k_hm: head-major (H, T, dh) bf16; cos_t/sin_t: (T, d_rope//2) f32
    gathered per token position. Applies NeoX rotary once per token; the q
    output is additionally pre-scaled by 1/sqrt(dh)."""
    H, Tp, dh = q_hm.shape
    r2 = d_rope // 2
    kern = partial(_rope_kernel, d_rope=d_rope, q_scale=q_scale)
    qk_spec = pl.BlockSpec((1, tr, dh), lambda h, i: (h, i, 0))
    cs_spec = pl.BlockSpec((tr, r2), lambda h, i: (i, 0))
    return pl.pallas_call(
        kern,
        out_shape=(jax.ShapeDtypeStruct((H, Tp, dh), q_hm.dtype),
                   jax.ShapeDtypeStruct((H, Tp, dh), k_hm.dtype)),
        grid=(H, Tp // tr),
        in_specs=[qk_spec, qk_spec, cs_spec, cs_spec],
        out_specs=[qk_spec, qk_spec],
        compiler_params=pltpu.CompilerParams(
            dimension_semantics=("parallel", "parallel"),
            vmem_limit_bytes=vmem_limit),
    )(q_hm, k_hm, cos_t, sin_t)


# ----------------------------------------------------------------------------
# Flash attention: grid (H, T/tq, T/tkv), online softmax, block-diagonal skip
# ----------------------------------------------------------------------------
def _flash_mha_kernel(kv_lo_ref, kv_hi_ref,                 # scalar prefetch
                      q_ref, k_ref, v_ref, seg_q_ref, seg_k_ref,
                      o_ref,
                      m_scr, l_scr, acc_scr,
                      *, window, tq, tkv):
    i = pl.program_id(1)                 # q-tile index   ("parallel")
    j = pl.program_id(2)                 # kv-tile index  ("arbitrary")

    # ---- init online-softmax state at the first kv tile --------------------
    @pl.when(j == 0)
    def _():
        m_scr[...] = jnp.full(m_scr.shape, -1e30, m_scr.dtype)
        l_scr[...] = jnp.zeros(l_scr.shape, l_scr.dtype)
        acc_scr[...] = jnp.zeros(acc_scr.shape, acc_scr.dtype)

    # ---- only kv tiles inside the [segment-start, causal-diagonal] range ---
    @pl.when((j >= kv_lo_ref[i]) & (j <= kv_hi_ref[i]))
    def _():
        q = q_ref[0]                     # (tq, dh)  bf16 (rope + scale applied)
        k = k_ref[0]                     # (tkv, dh) bf16 (rope applied)
        v = v_ref[0]                     # (tkv, dh) bf16

        # causal + same-segment (+ optional sliding-window) mask, in-kernel.
        row = i * tq + jax.lax.broadcasted_iota(jnp.int32, (tq, tkv), 0)
        col = j * tkv + jax.lax.broadcasted_iota(jnp.int32, (tq, tkv), 1)
        mask = (seg_q_ref[...] == seg_k_ref[...]) & (row >= col)
        if window >= 0:
            mask = mask & ((row - col) <= window)

        # scores: "qd,kd->qk" on the MXU, f32 accumulation; scale already
        # folded into q by the rope pre-pass.
        s = jax.lax.dot_general(q, k, (((1,), (1,)), ((), ())),
                                preferred_element_type=jnp.float32)
        s = jnp.where(mask, s, -1e30)

        m_prev = m_scr[...]
        m_new = jnp.maximum(m_prev, jnp.max(s, axis=-1, keepdims=True))
        alpha = jnp.exp(m_prev - m_new)
        # NOTE: this second mask is load-bearing (rows fully masked inside a
        # kv tile have m_new == -1e30, where exp(s - m_new) == 1).
        p = jnp.where(mask, jnp.exp(s - m_new), 0.0)

        l_scr[...] = alpha * l_scr[...] + jnp.sum(p, axis=-1, keepdims=True)
        acc_scr[...] = alpha * acc_scr[...] + jnp.dot(
            p.astype(jnp.bfloat16), v, preferred_element_type=jnp.float32)
        m_scr[...] = m_new

    # ---- finalize: lane-dense (tq, dh) store ------------------------------
    @pl.when(j == pl.num_programs(2) - 1)
    def _():
        inv_l = pl.reciprocal(l_scr[...], approx=True)        # EUP slot
        o_ref[0] = (acc_scr[...] * inv_l).astype(o_ref.dtype)


def pallas_flash_mha(kv_lo, kv_hi, q, k, v, seg_rows, seg_cols,
                     *, window, tq, tkv, vmem_limit):
    """q/k/v: head-major (H, T, dh) bf16 (rope already applied, q pre-scaled);
    kv_lo/kv_hi: (T//tq,) int32 per-q-tile kv block range (scalar prefetch);
    seg_rows: (T, 1) / seg_cols: (1, T) int32 segment ids.
    Returns head-major (H, T, dh) attention output (bf16)."""
    H, Tp, dh = q.shape
    nq, nkv = Tp // tq, Tp // tkv
    kern = partial(_flash_mha_kernel, window=window, tq=tq, tkv=tkv)

    # Clamp kv-side block indices to [kv_lo, kv_hi]: dead tiles reuse the
    # previous block index, so Pallas skips their HBM->VMEM DMA entirely.
    def kv_idx(h, i, j, lo_ref, hi_ref):
        j_eff = jnp.minimum(jnp.maximum(j, lo_ref[i]), hi_ref[i])
        return (h, j_eff, 0)

    def segk_idx(h, i, j, lo_ref, hi_ref):
        j_eff = jnp.minimum(jnp.maximum(j, lo_ref[i]), hi_ref[i])
        return (0, j_eff)

    grid_spec = pltpu.PrefetchScalarGridSpec(
        num_scalar_prefetch=2,
        grid=(H, nq, nkv),
        in_specs=[
            pl.BlockSpec((1, tq, dh), lambda h, i, j, lo, hi: (h, i, 0)),   # q
            pl.BlockSpec((1, tkv, dh), kv_idx),                             # k
            pl.BlockSpec((1, tkv, dh), kv_idx),                             # v
            pl.BlockSpec((tq, 1), lambda h, i, j, lo, hi: (i, 0)),          # seg rows
            pl.BlockSpec((1, tkv), segk_idx),                               # seg cols
        ],
        out_specs=pl.BlockSpec((1, tq, dh), lambda h, i, j, lo, hi: (h, i, 0)),
        scratch_shapes=[pltpu.VMEM((tq, 1), jnp.float32),    # running max
                        pltpu.VMEM((tq, 1), jnp.float32),    # running sum
                        pltpu.VMEM((tq, dh), jnp.float32)],  # output acc
    )
    # TODO(synk): sweep pipeline_mode=pl.Buffered(3) on the k/v specs once the
    #             DMA-skip makes the loop latency-bound.
    return pl.pallas_call(
        kern,
        out_shape=jax.ShapeDtypeStruct((H, Tp, dh), jnp.bfloat16),
        grid_spec=grid_spec,
        compiler_params=pltpu.CompilerParams(
            dimension_semantics=("parallel", "parallel", "arbitrary"),
            vmem_limit_bytes=vmem_limit),
    )(kv_lo, kv_hi, q, k, v, seg_rows, seg_cols)


# ----------------------------------------------------------------------------
# Module wrapper (parameter setup + glue in plain JAX)
# ----------------------------------------------------------------------------
class CausalMHAPallas:
    """Pallas port of CausalMHA.forward() for packed-dense (cu_seqlens) inputs."""

    def __init__(self, d, num_heads, rotary_emb_dim, window_size=-1, *,
                 key, param_dtype=jnp.bfloat16, out_dtype=jnp.float32,
                 tiles=None):
        self.d = d
        self.num_heads = num_heads
        self.d_head, r = divmod(d, num_heads)
        assert r == 0
        assert rotary_emb_dim % 2 == 0 and 2 <= rotary_emb_dim <= self.d_head
        self.rotary_emb_dim = rotary_emb_dim
        self.window_size = (window_size, 0)       # (-1, 0) => plain causal
        self.out_dtype = out_dtype                # bf16 halves final writeback
        self._cfg = _hw_config()
        if tiles:
            self._cfg.update(tiles)

        k1, k2 = jax.random.split(key)
        # nn.Linear(d, 3d, bias=False): torch weight (3d, d), y = x @ W^T.
        # Store the kernel-friendly (K, N) layout once, in bf16, at init.
        wqkv = jax.random.normal(k1, (3 * d, d), jnp.float32) * 0.02
        wout = jax.random.normal(k2, (d, d), jnp.float32) * 0.02
        self.Wqkv_t = wqkv.T.astype(param_dtype)     # (d, 3d)
        self.Wout_t = wout.T.astype(param_dtype)     # (d, d)

        # RotaryNeoX.rotary_cache(10000.0, rotary_emb_dim, msl) -- extended
        # lazily if max_seqlen exceeds the cached length.
        self._rope_len = 0
        self._ensure_rope_cache(2048)

    def _ensure_rope_cache(self, msl):
        if self._rope_len >= msl:
            return
        inv_freq = 1.0 / (10000.0 ** (
            jnp.arange(0, self.rotary_emb_dim, 2, dtype=jnp.float32)
            / self.rotary_emb_dim))
        t = jnp.arange(msl, dtype=jnp.float32)
        freqs = jnp.outer(t, inv_freq)
        self.rope_cos = jnp.cos(freqs)               # (msl, rotary_emb_dim // 2)
        self.rope_sin = jnp.sin(freqs)
        self._rope_len = msl

    def __call__(self, x, cu_seqlens, max_seqlen):
        T0, d = x.shape
        assert d == self.d
        H, dh = self.num_heads, self.d_head
        cfg = self._cfg
        cu = cu_seqlens.astype(jnp.int32)
        nseq = int(cu.shape[0]) - 1

        self._ensure_rope_cache(max(2048, int(max_seqlen)))

        # per-token segment id + within-sequence position (wrapper glue)
        tok = jnp.arange(T0, dtype=jnp.int32)
        seg = (jnp.searchsorted(cu, tok, side='right') - 1).astype(jnp.int32)
        pos = jnp.minimum(tok - cu[seg], self._rope_len - 1)

        # ---- pad the token dim so preferred tiles always divide it ---------
        prefs = (cfg['attn_tq'], cfg['attn_tkv'], cfg['mm_tm'])
        row_mult = max(prefs)
        assert all(row_mult % p == 0 for p in prefs)
        Tp = _round_up(T0, row_mult) if T0 >= min(prefs) else T0
        pad = Tp - T0
        if pad:
            x = jnp.pad(x, ((0, pad), (0, 0)))
            # pad tokens get their own segment id => attend only to themselves
            seg = jnp.concatenate([seg, jnp.full((pad,), nseq, jnp.int32)])
            pos = jnp.concatenate([pos, jnp.zeros((pad,), jnp.int32)])

        tq = _fit_tile(Tp, cfg['attn_tq'])
        tkv = _fit_tile(Tp, cfg['attn_tkv'])
        tm = _fit_tile(Tp, cfg['mm_tm'])

        # ---- QKV projection: full-K tiled matmul, bf16 MXU / f32 acc -------
        qkv = pallas_matmul(x.astype(jnp.bfloat16), self.Wqkv_t, jnp.bfloat16,
                            tm=tm, tn=cfg['mm_tn'],
                            vmem_limit=cfg['vmem_limit'])

        # ---- head-major relayout (single wrapper-side XLA copy) ------------
        qkv_hm = jnp.transpose(qkv.reshape(Tp, 3, H, dh), (1, 2, 0, 3))
        q_hm, k_hm, v_hm = qkv_hm[0], qkv_hm[1], qkv_hm[2]      # (H, Tp, dh)

        # ---- NeoX rotary: applied once per token, q pre-scaled by 1/sqrt(dh)
        cos_t = self.rope_cos[pos]                               # (Tp, r2) f32
        sin_t = self.rope_sin[pos]
        scale = 1.0 / float(dh) ** 0.5
        q_rot, k_rot = pallas_rope(q_hm, k_hm, cos_t, sin_t,
                                   d_rope=self.rotary_emb_dim, q_scale=scale,
                                   tr=tq, vmem_limit=cfg['vmem_limit'])

        # ---- per-q-tile kv block range (segment start .. causal diagonal) --
        nq = Tp // tq
        q_start = jnp.arange(nq, dtype=jnp.int32) * tq
        seg_first = seg[q_start]
        kv_lo = (cu[seg_first] // tkv).astype(jnp.int32)
        kv_hi = ((q_start + tq - 1) // tkv).astype(jnp.int32)

        seg_rows = seg.reshape(Tp, 1)
        seg_cols = seg.reshape(1, Tp)

        # ---- flash attention (head-major, online softmax) ------------------
        o_hm = pallas_flash_mha(kv_lo, kv_hi, q_rot, k_rot, v_hm,
                                seg_rows, seg_cols,
                                window=self.window_size[0],
                                tq=tq, tkv=tkv,
                                vmem_limit=cfg['vmem_limit'])    # (H, Tp, dh)

        # back to token-major (T, D) for the output projection (wrapper copy)
        o = jnp.transpose(o_hm, (1, 0, 2)).reshape(Tp, d)

        # ---- output projection ----------------------------------------------
        out = pallas_matmul(o, self.Wout_t, self.out_dtype,
                            tm=tm, tn=cfg['mm_tn'],
                            vmem_limit=cfg['vmem_limit'])
        return out[:T0]


# ----------------------------------------------------------------------------
# Pure-JAX f32 reference of the same forward semantics (for verification)
# ----------------------------------------------------------------------------
def reference_forward(m, x, cu_seqlens):
    T, d = x.shape
    H, dh = m.num_heads, m.d_head
    Wqkv = m.Wqkv_t.astype(jnp.float32)
    Wout = m.Wout_t.astype(jnp.float32)

    qkv = (x @ Wqkv).reshape(T, 3, H, dh)
    q, k, v = qkv[:, 0], qkv[:, 1], qkv[:, 2]

    tok = jnp.arange(T, dtype=jnp.int32)
    seg = jnp.searchsorted(cu_seqlens, tok, side='right') - 1
    pos = tok - cu_seqlens[seg]
    cos, sin = m.rope_cos[pos], m.rope_sin[pos]
    r2 = m.rotary_emb_dim // 2

    def rope(xh):
        x1 = xh[..., :r2]
        x2 = xh[..., r2:m.rotary_emb_dim]
        rest = xh[..., m.rotary_emb_dim:]
        c, s_ = cos[:, None, :], sin[:, None, :]
        return jnp.concatenate([x1 * c - x2 * s_, x2 * c + x1 * s_, rest], -1)

    q, k = rope(q), rope(k)
    allowed = (seg[:, None] == seg[None, :]) & (tok[:, None] >= tok[None, :])
    if m.window_size[0] >= 0:
        allowed = allowed & ((tok[:, None] - tok[None, :]) <= m.window_size[0])
    scale = 1.0 / float(dh) ** 0.5
    s = jnp.einsum('qhd,khd->hqk', q, k) * scale
    s = jnp.where(allowed[None], s, -jnp.inf)
    p = jax.nn.softmax(s, axis=-1)
    o = jnp.einsum('hqk,khd->qhd', p, v).reshape(T, d)
    return (o @ Wout).astype(jnp.float32)


# ----------------------------------------------------------------------------
if __name__ == "__main__":
    key = jax.random.PRNGKey(0)
    kx1, kp1, kx2, kp2 = jax.random.split(key, 4)

    # ---- test 1: tiny shapes, single-tile path ------------------------------
    d, num_heads, rotary_emb_dim = 32, 4, 8         # d_head = 8
    T = 16
    cu_seqlens = jnp.array([0, 6, 16], dtype=jnp.int32)    # two seqs: len 6, 10
    x = jax.random.normal(kx1, (T, d), jnp.float32)
    mha = CausalMHAPallas(d, num_heads, rotary_emb_dim, window_size=-1, key=kp1)

    out = jax.block_until_ready(mha(x, cu_seqlens, 10))
    ref = reference_forward(mha, x, cu_seqlens)
    assert out.shape == (T, d)
    np.testing.assert_allclose(np.asarray(out), np.asarray(ref),
                               rtol=2e-2, atol=2e-2)

    # ---- test 2: multi-tile path (padding, kv-tile DMA skip, sliding window) -
    d2, heads2, rope2 = 64, 8, 8
    T2 = 300                                          # pads to 384 with 128-tiles
    cu2 = jnp.array([0, 40, 130, 300], dtype=jnp.int32)
    x2 = jax.random.normal(kx2, (T2, d2), jnp.float32)
    mha2 = CausalMHAPallas(d2, heads2, rope2, window_size=64, key=kp2,
                           tiles=dict(attn_tq=128, attn_tkv=128,
                                      mm_tm=128, mm_tn=128))
    out2 = jax.block_until_ready(mha2(x2, cu2, 170))
    ref2 = reference_forward(mha2, x2, cu2)
    assert out2.shape == (T2, d2)
    np.testing.assert_allclose(np.asarray(out2), np.asarray(ref2),
                               rtol=2e-2, atol=2e-2)

    print("KERNEL_OK")
</pallas_src>

<mosaic_0001>
module attributes {stable_mosaic.version = 11 : i64} {
  func.func @_matmul_kernel(%arg0: i32, %arg1: i32, %arg2: memref<16x32xbf16, #tpu.memory_space<vmem>>, %arg3: memref<32x96xbf16, #tpu.memory_space<vmem>>, %arg4: memref<16x96xbf16, #tpu.memory_space<vmem>>) attributes {dimension_semantics = [#tpu.dimension_semantics<parallel>, #tpu.dimension_semantics<parallel>], iteration_bounds = array<i64: 1, 1>, scalar_prefetch = 0 : i64, scratch_operands = 0 : i64, tpu.core_type = #tpu.core_type<tc>, window_params = [{transform_indices = @transform_0, window_bounds = array<i64: 16, 32>}, {transform_indices = @transform_1, window_bounds = array<i64: 32, 96>}, {transform_indices = @transform_2, window_bounds = array<i64: 16, 96>}]} {
    %c0 = arith.constant 0 : index
    %c0_0 = arith.constant 0 : index
    %0 = vector.load %arg2[%c0, %c0_0] : memref<16x32xbf16, #tpu.memory_space<vmem>>, vector<16x32xbf16>
    %c0_1 = arith.constant 0 : index
    %c0_2 = arith.constant 0 : index
    %1 = vector.load %arg3[%c0_1, %c0_2] : memref<32x96xbf16, #tpu.memory_space<vmem>>, vector<32x96xbf16>
    %cst = arith.constant dense<0.000000e+00> : vector<16x96xf32>
    %2 = tpu.matmul %0, %1, %cst {dimension_numbers = #tpu.dot_dimension_numbers<[1], [0], [0], [1], [0, 0, 1, 1], [], []>} : vector<16x32xbf16>, vector<32x96xbf16>, vector<16x96xf32> -> vector<16x96xf32>
    %3 = arith.truncf %2 : vector<16x96xf32> to vector<16x96xbf16>
    %c0_3 = arith.constant 0 : index
    %c0_4 = arith.constant 0 : index
    %4 = vector.load %arg4[%c0_3, %c0_4] : memref<16x96xbf16, #tpu.memory_space<vmem>>, vector<16x96xbf16>
    tpu.vector_store %arg4[%c0_3, %c0_4], %3 {strides = array<i32>} : memref<16x96xbf16, #tpu.memory_space<vmem>>, vector<16x96xbf16>,
    return
  }
  func.func @transform_0(%arg0: i32, %arg1: i32) -> (i32, i32) {
    %c0_i32 = arith.constant 0 : i32
    %c0_i32_0 = arith.constant 0 : i32
    return %arg0, %c0_i32 : i32, i32
  }
  func.func @transform_1(%arg0: i32, %arg1: i32) -> (i32, i32) {
    %c0_i32 = arith.constant 0 : i32
    %c0_i32_0 = arith.constant 0 : i32
    return %c0_i32, %arg1 : i32, i32
  }
  func.func @transform_2(%arg0: i32, %arg1: i32) -> (i32, i32) {
    %c0_i32 = arith.constant 0 : i32
    return %arg0, %arg1 : i32, i32
  }
}

</mosaic_0001>

<llo_original>
// kernel: tpu_custom_call.1
$region0: #{tpu_custom_call.1}
  #allocation0 [shape = 'u32[]', space=smem, size = 0x4, offset = 0x4, fixed_abs, tag = 'smem constant byte address 0x4 - core index']
  #allocation1 [shape = 'u32[144,128]{1,0:T(1,128)}', space=vmem, size = 0x12000, scoped, tag = 'internal scratch']
  %s0 = inlined_call_operand.hbm [shape: bf16[16,32], index: 0, kind: input, shape index: {}]
  %s1 = inlined_call_operand.hbm [shape: bf16[32,96], index: 1, kind: input, shape index: {}]
  %s2 = inlined_call_operand.hbm [shape: bf16[16,96], index: 2, kind: output, shape index: {}]
  %s3 = sld [smem:[#allocation0]]
  $region26: #{tpu_custom_call.1} parent=0
    _
  %s5 = ssub.s32 1, %s3
  %s6 = scalar_select 0, %s5, %s3
  $region1: #{tpu_custom_call.1} parent=0
    #allocation2 [shape = 'u8[4096]{0}', space=vmem, size = 0x1000, scoped, tag = 'input window, operand 0, single buffered']
    #allocation3 [shape = 's32[1]{0}', space=sflag, size = 0x4, scoped, tag = 'scoped memory for tpu_custom_call.1']
    #allocation4 [shape = 's32[1]{0}', space=sflag, size = 0x4, scoped, tag = 'scoped memory for tpu_custom_call.1']
    #allocation5 [shape = 'u8[8192]{0}', space=vmem, size = 0x2000, scoped, tag = 'input window, operand 1, single buffered']
    #allocation6 [shape = 's32[1]{0}', space=sflag, size = 0x4, scoped, tag = 'scoped memory for tpu_custom_call.1']
    #allocation7 [shape = 'u8[4096]{0}', space=vmem, size = 0x1000, scoped, tag = 'output window, operand 0, single buffered']
    %7 = vsyncpa [#allocation3], 0
    %8 = vsyncpa [#allocation6], 0
    %9 = vsyncpa [#allocation4], 0
    // Predicated region
    $region2: #{tpu_custom_call.1} parent=1 // pred_check
      _
    $region3: #{tpu_custom_call.1} parent=1 // pred_check_branch
      %11 = sbr.rel (0) target = $region5
    $region4: #{tpu_custom_call.1} parent=1 // pred_region
      %s13 = ssub.s32 128, 128
      %14 = vsyncadd [#allocation3], %s13
      %s15 = sshll.u32 [#allocation2], 4
      %s16 = int_to_ptr.vmem [resolvable:$true] %s15
      %21 = dma.hbm_to_vmem [thread:$0]  %s0, 128, %s16, [#allocation3], 64, 64, 4
    $region5: #{tpu_custom_call.1} parent=1 // pred_fallthru
      _
    // Predicated region
    $region6: #{tpu_custom_call.1} parent=1 // pred_check
      _
    $region7: #{tpu_custom_call.1} parent=1 // pred_check_branch
      %23 = sbr.rel (0) target = $region9
    $region8: #{tpu_custom_call.1} parent=1 // pred_region
      %s25 = ssub.s32 256, 256
      %26 = vsyncadd [#allocation6], %s25
      %s27 = sshll.u32 [#allocation5], 4
      %s28 = int_to_ptr.vmem [resolvable:$true] %s27
      %33 = dma.hbm_to_vmem [thread:$0]  %s1, 256, %s28, [#allocation6], 64, 64, 4
    $region9: #{tpu_custom_call.1} parent=1 // pred_fallthru
      _
    // Predicated region
    $region10: #{tpu_custom_call.1} parent=1 // pred_check
      _
    $region11: #{tpu_custom_call.1} parent=1 // pred_check_branch
      %35 = sbr.rel (0) target = $region13
    $region12: #{tpu_custom_call.1} parent=1 // pred_region
      %36 = dma.done [#allocation3], 128
    $region13: #{tpu_custom_call.1} parent=1 // pred_fallthru
      _
    // Predicated region
    $region14: #{tpu_custom_call.1} parent=1 // pred_check
      _
    $region15: #{tpu_custom_call.1} parent=1 // pred_check_branch
      %38 = sbr.rel (0) target = $region17
    $region16: #{tpu_custom_call.1} parent=1 // pred_region
      %39 = dma.done [#allocation6], 256
    $region17: #{tpu_custom_call.1} parent=1 // pred_fallthru
      _
    %v41 = vld [vmem:[#allocation2] sm:$0xf]
    %v42 = vld [vmem:[#allocation2 + $0x4] sm:$0xf]
    %v43 = vld [vmem:[#allocation5] sm:$0xf]
    %v44 = vld [vmem:[#allocation5 + $0x4] sm:$0xf]
    %v45 = vld [vmem:[#allocation5 + $0x8] sm:$0xf]
    %v46 = vld [vmem:[#allocation5 + $0xc] sm:$0xf]
    %v49 = vunpack.c.l.b16 %v41
    %v50 = vunpack.c.l.b16 %v42
    %v51 = vpack.c.b16 %v50, %v49
    %v56 = vunpack.c.l.b16 %v43
    %v57 = vunpack.c.l.b16 %v44
    %v58 = vunpack.c.l.b16 %v45
    %v59 = vunpack.c.l.b16 %v46
    %v60 = vpack.c.b16 %v57, %v56
    %v61 = vpack.c.b16 %v59, %v58
    %vm64 = vcmask 261120
    %v66 = vsel %vm64, %v51, 0
    %68 = vmatprep.subr.bf16.mxu0 0
    %69 = vmatpush1.bf16.msra.mxu0 %v60
    %70 = vmatprep.subr.bf16.mxu0 0
    %71 = vmatpush1.bf16.msra.mxu0 %v61
    %72 = vmatprep.subr.bf16.mxu0 0
    %73 = vmatpush1.bf16.msra.mxu0 0
    %74 = vmatprep.subr.bf16.mxu0 0
    %75 = vmatpush1.bf16.msra.mxu0 0
    %76 = vmatprep.subr.bf16.mxu0 0
    %77 = vmatpush1.bf16.msra.mxu0 0
    %78 = vmatprep.subr.bf16.mxu0 0
    %79 = vmatpush1.bf16.msra.mxu0 0
    %80 = vmatprep.subr.bf16.mxu0 0
    %81 = vmatpush1.bf16.msra.mxu0 0
    %82 = vmatprep.subr.bf16.mxu0 0
    %83 = vmatpush1.bf16.msra.mxu0 0
    %84 = vmatprep.subr.bf16.mxu0 0
    %85 = vmatpush1.bf16.msra.mxu0 0
    %86 = vmatprep.subr.bf16.mxu0 0
    %87 = vmatpush1.bf16.msra.mxu0 0
    %88 = vmatprep.subr.bf16.mxu0 0
    %89 = vmatpush1.bf16.msra.mxu0 0
    %90 = vmatprep.subr.bf16.mxu0 0
    %91 = vmatpush1.bf16.msra.mxu0 0
    %92 = vmatprep.subr.bf16.mxu0 0
    %93 = vmatpush1.bf16.msra.mxu0 0
    %94 = vmatprep.subr.bf16.mxu0 0
    %95 = vmatpush1.bf16.msra.mxu0 0
    %96 = vmatprep.subr.bf16.mxu0 0
    %97 = vmatpush1.bf16.msra.mxu0 0
    %98 = vmatprep.subr.bf16.mxu0 0
    %99 = vmatpush1.bf16.msra.mxu0 0
    %100 = vmatprep.mubr.bf16.mxu0 0
    %101 = vmatmul.mubr.bf16.gmra.mrb[0].mxu0 %v66
    %v102 = vpop.f32.mrb[0].mxu0
    %v103 = vadd.f32 0.0, %v102
    %v104 = vpop.f32.mrb[0].mxu0
    %v105 = vpop.f32.mrb[0].mxu0
    %v106 = vadd.f32 0.0, %v105
    %v107 = vpop.f32.mrb[0].mxu0
    %108 = vdwg.mxu0
    %v109 = vpack.c.bf16 %v106, %v103
    %v111 = vunpack.c.l.b16 %v109
    %v112 = vunpack.c.h.b16 %v109
    %v113 = vpack.c.b16 %v111, %v111
    %v114 = vpack.c.b16 %v112, %v112
    %vm117 = vcmask 781312
    %118 = vst.msk [vmem:[#allocation7] sm:$0xf] %vm117, %v113
    %119 = vst.msk [vmem:[#allocation7 + $0x4] sm:$0xf] %vm117, %v114
    // Predicated region
    $region18: #{tpu_custom_call.1} parent=1 // pred_check
      _
    $region19: #{tpu_custom_call.1} parent=1 // pred_check_branch
      %121 = sbr.rel (0) target = $region21
    $region20: #{tpu_custom_call.1} parent=1 // pred_region
      %s123 = ssub.s32 128, 128
      %124 = vsyncadd [#allocation4], %s123
      %s125 = sshll.u32 [#allocation7], 4
      %s126 = int_to_ptr.vmem [resolvable:$true] %s125
      %131 = dma.vmem_to_hbm [thread:$0]  %s126, 128, %s2, [#allocation4], 64, 64, 4
    $region21: #{tpu_custom_call.1} parent=1 // pred_fallthru
      _
    // Predicated region
    $region22: #{tpu_custom_call.1} parent=1 // pred_check
      _
    $region23: #{tpu_custom_call.1} parent=1 // pred_check_branch
      %133 = sbr.rel (0) target = $region25
    $region24: #{tpu_custom_call.1} parent=1 // pred_region
      %134 = dma.done [#allocation4], 128
    $region25: #{tpu_custom_call.1} parent=1 // pred_fallthru
      _
    %135 = vsyncpa [#allocation3], 1
    %136 = vsyncpa [#allocation6], 1
    %137 = vsyncpa [#allocation4], 1

</llo_original>
